<compile_context>
chip_gen: v7x
topology: tpu7x:2x2x1
jax: 0.10.0
libtpu: 0.0.40
codegen_flags: <defaults>
</compile_context>

<pallas_src>
import functools

import jax
import jax.numpy as jnp
from jax.experimental import pallas as pl
from jax.experimental.pallas import tpu as pltpu


def _color_mean_kernel(x_ref, o_ref, acc_ref, *, inv_s, s_total, tile_s, need_mask):
    """Accumulate per-row (= per batch*channel) spatial sums over lane tiles.

    x_ref  : (ROWS, TILE_S) block of the flattened (B*C, S) input (native dtype).
    o_ref  : (ROWS, 1) per-row spatial mean (f32), written on the last spatial step.
    acc_ref: (ROWS, ACC_W) f32 lane-shaped partial-sum accumulator (VMEM scratch).
    """
    k = pl.program_id(1)

    @pl.when(k == 0)
    def _():
        acc_ref[...] = jnp.zeros_like(acc_ref)

    rows, cw = acc_ref.shape          # chunk width == accumulator lane width
    nchunks = tile_s // cw

    if need_mask:
        lane = jax.lax.broadcasted_iota(jnp.int32, (rows, cw), 1)
        base = k * tile_s             # first global column of this tile

    # Lane-aligned static slices + per-chunk upcast + VPU adds only.
    acc = acc_ref[...]
    for j in range(nchunks):
        xj = x_ref[:, j * cw:(j + 1) * cw].astype(jnp.float32)
        if need_mask:
            # Boundary-block columns beyond the true spatial extent are
            # unspecified (no host pad); zero them via select (NaN-safe).
            xj = jnp.where(base + j * cw + lane < s_total, xj, 0.0)
        acc = acc + xj
    acc_ref[...] = acc

    # Single cross-lane reduce + mean only in the epilogue of the reduction axis.
    @pl.when(k == pl.num_programs(1) - 1)
    def _():
        o_ref[...] = jnp.sum(acc_ref[...], axis=-1, keepdims=True) * inv_s


def color_loss(x, *, tile_s=16384, rows_block=32):
    """x: (B, C, H, W) array (NCHW, C=3 for RGB). Returns (B, 1, 1, 1) like PyTorch."""
    B, C, H, W = x.shape
    S = H * W
    R = B * C

    # Row block: the full R if it fits (block dim == full array dim is always
    # legal, even if not a multiple of 8), otherwise a multiple of 8; outputs of
    # out-of-range rows in a partial last row-block are never written/used.
    if R <= rows_block:
        rows_block_eff = R
    else:
        rows_block_eff = max(8, (rows_block // 8) * 8)

    # Lane tile: multiple of 128 (or the full dim when S < 128), capped so the
    # double-buffered input block stays within ~8 MiB of VMEM.
    itemsize = jnp.dtype(x.dtype).itemsize
    if S < 128:
        tile_s_eff = S                      # block dim == full array dim
    else:
        vmem_budget = 8 * 1024 * 1024       # bytes for the 2x-buffered input block
        max_tile = vmem_budget // (2 * rows_block_eff * itemsize)
        tile_s_eff = min(tile_s, max_tile, (S // 128) * 128)
        tile_s_eff = max(128, (tile_s_eff // 128) * 128)
    need_mask = (S % tile_s_eff) != 0

    grid = (pl.cdiv(R, rows_block_eff), pl.cdiv(S, tile_s_eff))
    acc_w = min(128, tile_s_eff)

    kernel = functools.partial(
        _color_mean_kernel,
        inv_s=1.0 / S, s_total=S, tile_s=tile_s_eff, need_mask=need_mask,
    )

    # Keep native dtype through the DMA; upcast happens per-chunk inside the kernel.
    x2 = x.reshape(R, S)                    # pure reshape: no pad, no extra HBM copy

    means = pl.pallas_call(
        kernel,
        grid=grid,
        in_specs=[pl.BlockSpec((rows_block_eff, tile_s_eff), lambda i, k: (i, k))],
        out_specs=pl.BlockSpec((rows_block_eff, 1), lambda i, k: (i, 0)),
        out_shape=jax.ShapeDtypeStruct((R, 1), jnp.float32),
        scratch_shapes=[pltpu.VMEM((rows_block_eff, acc_w), jnp.float32)],
        compiler_params=pltpu.CompilerParams(
            dimension_semantics=("parallel", "arbitrary")
        ),
    )(x2)

    # Tiny per-batch combine in the wrapper (negligible compute).
    m = means.reshape(B, C)                                  # (B, C) channel means
    d = (m - 0.5) ** 2
    k = jnp.sqrt(jnp.sum(d * d, axis=1, keepdims=True))      # (B, 1)
    return k.reshape(B, 1, 1, 1).astype(x.dtype)


def _color_loss_ref(x):
    mean_rgb = jnp.mean(x.astype(jnp.float32), axis=(2, 3), keepdims=True)  # (B, 3, 1, 1)
    d = (mean_rgb - 0.5) ** 2
    k = jnp.sqrt(jnp.sum(d ** 2, axis=1, keepdims=True))                    # (B, 1, 1, 1)
    return k.astype(x.dtype)


if __name__ == "__main__":
    key = jax.random.PRNGKey(0)
    B, C, H, W = 2, 3, 16, 16  # ColorLoss implies exactly 3 channels (RGB)
    x = jax.random.uniform(key, (B, C, H, W), dtype=jnp.float32)

    k = color_loss(x)
    k = jax.block_until_ready(k)

    k_ref = _color_loss_ref(x)
    assert k.shape == (B, 1, 1, 1)
    assert jnp.allclose(k, k_ref, atol=1e-6, rtol=1e-5)

    print("KERNEL_OK")
</pallas_src>

<mosaic_0001>
module attributes {stable_mosaic.version = 11 : i64} {
  func.func @_color_mean_kernel(%arg0: i32, %arg1: i32, %arg2: memref<6x256xf32, #tpu.memory_space<vmem>>, %arg3: memref<6x1xf32, #tpu.memory_space<vmem>>, %arg4: memref<6x128xf32, #tpu.memory_space<vmem>>) attributes {dimension_semantics = [#tpu.dimension_semantics<parallel>, #tpu.dimension_semantics<arbitrary>], iteration_bounds = array<i64: 1, 1>, scalar_prefetch = 0 : i64, scratch_operands = 1 : i64, tpu.core_type = #tpu.core_type<tc>, window_params = [{transform_indices = @transform_0, window_bounds = array<i64: 6, 256>}, {transform_indices = @transform_1, window_bounds = array<i64: 6, 1>}]} {
    %c0_i32 = arith.constant 0 : i32
    %0 = arith.cmpi eq, %arg1, %c0_i32 : i32
    %1 = arith.extui %0 : i1 to i32
    %c0_i32_0 = arith.constant 0 : i32
    %2 = arith.cmpi ne, %1, %c0_i32_0 : i32
    scf.if %2 {
      %cst = arith.constant 0.000000e+00 : f32
      %12 = vector.broadcast %cst : f32 to vector<6x128xf32>
      %c0_9 = arith.constant 0 : index
      %c0_10 = arith.constant 0 : index
      %13 = vector.load %arg4[%c0_9, %c0_10] : memref<6x128xf32, #tpu.memory_space<vmem>>, vector<6x128xf32>
      tpu.vector_store %arg4[%c0_9, %c0_10], %12 {strides = array<i32>} : memref<6x128xf32, #tpu.memory_space<vmem>>, vector<6x128xf32>,
    } else {
    }
    %c0 = arith.constant 0 : index
    %c0_1 = arith.constant 0 : index
    %3 = vector.load %arg4[%c0, %c0_1] : memref<6x128xf32, #tpu.memory_space<vmem>>, vector<6x128xf32>
    %c0_2 = arith.constant 0 : index
    %c0_3 = arith.constant 0 : index
    %4 = vector.load %arg2[%c0_2, %c0_3] : memref<6x256xf32, #tpu.memory_space<vmem>>, vector<6x128xf32>
    %5 = arith.addf %3, %4 : vector<6x128xf32>
    %c0_4 = arith.constant 0 : index
    %c128 = arith.constant 128 : index
    %6 = vector.load %arg2[%c0_4, %c128] : memref<6x256xf32, #tpu.memory_space<vmem>>, vector<6x128xf32>
    %7 = arith.addf %5, %6 : vector<6x128xf32>
    %c0_5 = arith.constant 0 : index
    %c0_6 = arith.constant 0 : index
    %8 = vector.load %arg4[%c0_5, %c0_6] : memref<6x128xf32, #tpu.memory_space<vmem>>, vector<6x128xf32>
    tpu.vector_store %arg4[%c0_5, %c0_6], %7 {strides = array<i32>} : memref<6x128xf32, #tpu.memory_space<vmem>>, vector<6x128xf32>,
    %c0_i32_7 = arith.constant 0 : i32
    %9 = arith.cmpi eq, %arg1, %c0_i32_7 : i32
    %10 = arith.extui %9 : i1 to i32
    %c0_i32_8 = arith.constant 0 : i32
    %11 = arith.cmpi ne, %10, %c0_i32_8 : i32
    scf.if %11 {
      %c0_9 = arith.constant 0 : index
      %c0_10 = arith.constant 0 : index
      %12 = vector.load %arg4[%c0_9, %c0_10] : memref<6x128xf32, #tpu.memory_space<vmem>>, vector<6x128xf32>
      %cst = arith.constant dense<0.000000e+00> : vector<6xf32>
      %13 = vector.multi_reduction <add>, %12, %cst [1] : vector<6x128xf32> to vector<6xf32>
      %14 = vector.shape_cast %13 : vector<6xf32> to vector<6x1xf32>
      %cst_11 = arith.constant 3.906250e-03 : f32
      %15 = vector.broadcast %cst_11 : f32 to vector<6x1xf32>
      %16 = arith.mulf %14, %15 : vector<6x1xf32>
      %c0_12 = arith.constant 0 : index
      %c0_13 = arith.constant 0 : index
      %17 = vector.load %arg3[%c0_12, %c0_13] : memref<6x1xf32, #tpu.memory_space<vmem>>, vector<6x1xf32>
      tpu.vector_store %arg3[%c0_12, %c0_13], %16 {strides = array<i32>} : memref<6x1xf32, #tpu.memory_space<vmem>>, vector<6x1xf32>,
    } else {
    }
    return
  }
  func.func @transform_0(%arg0: i32, %arg1: i32) -> (i32, i32) {
    %c0_i32 = arith.constant 0 : i32
    return %arg0, %arg1 : i32, i32
  }
  func.func @transform_1(%arg0: i32, %arg1: i32) -> (i32, i32) {
    %c0_i32 = arith.constant 0 : i32
    %c0_i32_0 = arith.constant 0 : i32
    return %arg0, %c0_i32 : i32, i32
  }
}

</mosaic_0001>

<llo_original>
// kernel: tpu_custom_call.1
$region0: #{tpu_custom_call.1}
  #allocation0 [shape = 'u32[]', space=smem, size = 0x4, offset = 0x4, fixed_abs, tag = 'smem constant byte address 0x4 - core index']
  #allocation1 [shape = 'u32[144,128]{1,0:T(1,128)}', space=vmem, size = 0x12000, scoped, tag = 'internal scratch']
  #allocation2 [shape = 'f32[6,128]{1,0:T(8,128)}', space=vmem, size = 0x1000, scoped, tag = 'scratch operand']
  %s0 = inlined_call_operand.hbm [shape: f32[6,256], index: 0, kind: input, shape index: {}]
  %s1 = inlined_call_operand.vmem [shape: f32[6,1], index: 1, kind: output, shape index: {}]
  %s2 = sld [smem:[#allocation0]]
  $region26: #{tpu_custom_call.1} parent=0
    _
  %s4 = ssub.s32 1, %s2
  %s5 = scalar_select 0, %s4, %s2
  $region1: #{tpu_custom_call.1} parent=0
    #allocation3 [shape = 'u8[8192]{0}', space=vmem, size = 0x2000, scoped, tag = 'input window, operand 0, single buffered']
    #allocation4 [shape = 's32[1]{0}', space=sflag, size = 0x4, scoped, tag = 'scoped memory for tpu_custom_call.1']
    %6 = vsyncpa [#allocation4], 0
    // Predicated region
    $region2: #{tpu_custom_call.1} parent=1 // pred_check
      _
    $region3: #{tpu_custom_call.1} parent=1 // pred_check_branch
      %8 = sbr.rel (0) target = $region5
    $region4: #{tpu_custom_call.1} parent=1 // pred_region
      %s10 = ssub.s32 256, 256
      %11 = vsyncadd [#allocation4], %s10
      %s13 = sshll.u32 [#allocation3], 4
      %s14 = int_to_ptr.vmem [resolvable:$true] %s13
      %16 = dma.hbm_to_vmem [thread:$0]  %s0, 256, %s14, [#allocation4]
    $region5: #{tpu_custom_call.1} parent=1 // pred_fallthru
      _
    // Predicated region
    $region6: #{tpu_custom_call.1} parent=1 // pred_check
      _
    $region7: #{tpu_custom_call.1} parent=1 // pred_check_branch
      %18 = sbr.rel (0) target = $region9
    $region8: #{tpu_custom_call.1} parent=1 // pred_region
      %19 = dma.done [#allocation4], 256
    $region9: #{tpu_custom_call.1} parent=1 // pred_fallthru
      _
    %p20 = scmp.eq.s32.totalorder 0, 0
    // Predicated region
    $region10: #{tpu_custom_call.1} parent=1 // pred_check
      %p21 = pneg %p20
    $region11: #{tpu_custom_call.1} parent=1 // pred_check_branch
      %23 = sbr.rel (%p21) target = $region13
    $region12: #{tpu_custom_call.1} parent=1 // pred_region
      %24 = vst [vmem:[#allocation2] sm:$0x3f] 0.0
    $region13: #{tpu_custom_call.1} parent=1 // pred_fallthru
      _
    %v25 = vld [vmem:[#allocation2] sm:$0x3f]
    %v26 = vld [vmem:[#allocation3] sm:$0x3f]
    %v27 = vadd.f32 %v25, %v26
    %v28 = vld [vmem:[#allocation3 + $0x8] sm:$0x3f]
    %v29 = vadd.f32 %v27, %v28
    %30 = vst [vmem:[#allocation2] sm:$0x3f] %v29
    // Predicated region
    $region14: #{tpu_custom_call.1} parent=1 // pred_check
      %p31 = pneg %p20
    $region15: #{tpu_custom_call.1} parent=1 // pred_check_branch
      %33 = sbr.rel (%p31) target = $region17
    $region16: #{tpu_custom_call.1} parent=1 // pred_region
      %v34 = vld [vmem:[#allocation2] sm:$0x3f]
      %vm35 = vcmask 1045504
      %v36 = vsel %vm35, %v34, 0.0
      %37 = vadd.xlane.f32.xlu0 %v36
      %v38 = vpop.xlane.xlu0 %37
      %v39 = vmul.f32 %v38, 0.00390625
      %vm40 = vcmask 5120
      %41 = vst.msk [vmem:[%s1] sm:$0x3f] %vm40, %v39
    $region17: #{tpu_custom_call.1} parent=1 // pred_fallthru
      _
    // Predicated region
    $region18: #{tpu_custom_call.1} parent=1 // pred_check
      _
    $region19: #{tpu_custom_call.1} parent=1 // pred_check_branch
      %43 = sbr.rel (0) target = $region21
    $region20: #{tpu_custom_call.1} parent=1 // pred_region
      _
    $region21: #{tpu_custom_call.1} parent=1 // pred_fallthru
      _
    // Predicated region
    $region22: #{tpu_custom_call.1} parent=1 // pred_check
      _
    $region23: #{tpu_custom_call.1} parent=1 // pred_check_branch
      %45 = sbr.rel (0) target = $region25
    $region24: #{tpu_custom_call.1} parent=1 // pred_region
      _
    $region25: #{tpu_custom_call.1} parent=1 // pred_fallthru
      _
    %46 = vsyncpa [#allocation4], 1

</llo_original>
